<compile_context>
chip_gen: v5e
topology: v5e:2x2
jax: 0.10.0
libtpu: 0.0.40
codegen_flags: <defaults>
</compile_context>

<pallas_src>
import functools
import math

import jax
import jax.numpy as jnp
from jax.experimental import pallas as pl
from jax.experimental.pallas import tpu as pltpu


def _attention_kernel(x_ref, wq_ref, wk_ref, wv_ref, o_ref, *, heads):
    # x_ref : (bb, S, Din)  batch block
    # w*_ref: (Din, L)      pre-transposed weights, VMEM-resident
    # o_ref : (bb, S, L)    output block, '(b h) y x -> b y (h x)' layout
    bb, S, Din = x_ref.shape
    L = wq_ref.shape[1]
    d = L // heads

    # Fused projections across the whole batch block: one big MXU matmul each
    # (softmax scale already folded into Wq).  Leading-dim reshapes only.
    x2 = x_ref[...].reshape(bb * S, Din)
    q = jnp.dot(x2, wq_ref[...],
                preferred_element_type=jnp.float32).reshape(bb, S, L)
    k = jnp.dot(x2, wk_ref[...],
                preferred_element_type=jnp.float32).reshape(bb, S, L)

    # Per-head attention map over the batch block:
    #   z[b, kf, qf] = sum_y k[b, y, kf] * q[b, y, qf], softmax over qf.
    ps = []
    for h in range(heads):
        qh = q[:, :, h * d:(h + 1) * d]                       # (bb, S, d)
        kh = k[:, :, h * d:(h + 1) * d]                       # (bb, S, d)
        z = jnp.einsum("byk,byq->bkq", kh, qh,
                       preferred_element_type=jnp.float32)    # (bb, d, d)
        z = z - jnp.max(z, axis=-1, keepdims=True)
        e = jnp.exp(z)
        ps.append(e * pl.reciprocal(jnp.sum(e, axis=-1, keepdims=True),
                                    approx=True))

    # V projection after the softmax (fewer live (bb, S, L) tensors above).
    v = jnp.dot(x2, wv_ref[...],
                preferred_element_type=jnp.float32).reshape(bb, S, L)

    outs = [
        jnp.einsum("bsy,byq->bsq", v[:, :, h * d:(h + 1) * d], ps[h],
                   preferred_element_type=jnp.float32)        # (bb, S, d)
        for h in range(heads)
    ]
    # Single lane-dense store of the full (bb, S, L) slab, already in the
    # '(b h) y x -> b y (h x)' layout.
    o_ref[...] = jnp.concatenate(outs, axis=-1).astype(o_ref.dtype)


def _pick_batch_block(B, S, Din, L, heads, itemsize, budget_bytes=8 << 20):
    """Largest divisor of B whose per-step VMEM footprint fits the budget."""
    d = L // heads

    def bytes_for(bb):
        io = 2 * bb * S * (Din + L) * itemsize            # double-buffered I/O
        inter = 3 * bb * S * L * 4 + heads * bb * d * d * 4
        weights = 3 * Din * L * itemsize
        return io + inter + weights

    bb = B
    while bb > 1 and (B % bb != 0 or bytes_for(bb) > budget_bytes):
        bb -= 1
    return bb


def attention_pallas(x, wq, wk, wv, heads):
    """x: (B, S, Din); w*: (layer_size, Din). Returns (B, S, layer_size)."""
    B, S, Din = x.shape
    L = wq.shape[0]
    assert L % heads == 0
    d = L // heads
    scale = 1.0 / math.sqrt(d)

    # Pre-transpose once at trace time to (Din, L) so the kernel feeds the MXU
    # an already (K, N)-shaped operand; fold the softmax scale into Wq.
    wq_t = (wq.T * scale).astype(x.dtype)
    wk_t = wk.T.astype(x.dtype)
    wv_t = wv.T.astype(x.dtype)

    bb = _pick_batch_block(B, S, Din, L, heads, x.dtype.itemsize)
    kernel = functools.partial(_attention_kernel, heads=heads)

    return pl.pallas_call(
        kernel,
        out_shape=jax.ShapeDtypeStruct((B, S, L), x.dtype),
        grid_spec=pltpu.PrefetchScalarGridSpec(
            num_scalar_prefetch=0,
            grid=(B // bb,),
            in_specs=[
                pl.BlockSpec((bb, S, Din), lambda b: (b, 0, 0)),
                # Constant block index -> weights DMA'd once, stay resident.
                pl.BlockSpec((Din, L), lambda b: (0, 0)),
                pl.BlockSpec((Din, L), lambda b: (0, 0)),
                pl.BlockSpec((Din, L), lambda b: (0, 0)),
            ],
            out_specs=pl.BlockSpec((bb, S, L), lambda b: (b, 0, 0)),
        ),
        compiler_params=pltpu.CompilerParams(
            dimension_semantics=("parallel",)),
    )(x, wq_t, wk_t, wv_t)


def attention_reference(x, wq, wk, wv, heads):
    """Pure-JAX reference mirroring the PyTorch forward."""
    B, S, Din = x.shape
    L = wq.shape[0]
    d = L // heads

    def proj(w):
        y = jnp.einsum("bsd,ld->bsl", x, w)                  # (B, S, L)
        return y.reshape(B, S, heads, d).transpose(0, 2, 1, 3).reshape(
            B * heads, S, d)

    q, k, v = proj(wq), proj(wk), proj(wv)
    z = jnp.einsum("byq,byk->bkq", q, k) / (d ** 0.5)
    z = jax.nn.softmax(z, axis=-1)
    o = jnp.einsum("byz,bvy->bvz", z, v)                     # (BH, S, d)
    return o.reshape(B, heads, S, d).transpose(0, 2, 1, 3).reshape(B, S, L)


if __name__ == "__main__":
    # Small shapes: batch=2, seq=8, input_size=32, layer_size=64, heads=2.
    B, S, Din, L, H = 2, 8, 32, 64, 2

    key = jax.random.PRNGKey(0)
    kx, kq, kk, kv = jax.random.split(key, 4)
    x = jax.random.normal(kx, (B, S, Din), dtype=jnp.float32)
    # Deterministic Linear weights (shape = (out_features, in_features), no bias).
    winit = 1.0 / (Din ** 0.5)
    wq = jax.random.uniform(kq, (L, Din), jnp.float32, -winit, winit)
    wk = jax.random.uniform(kk, (L, Din), jnp.float32, -winit, winit)
    wv = jax.random.uniform(kv, (L, Din), jnp.float32, -winit, winit)

    out = attention_pallas(x, wq, wk, wv, H)
    out = jax.block_until_ready(out)

    ref = attention_reference(x, wq, wk, wv, H)
    assert out.shape == (B, S, L), out.shape
    # Slightly loosened tolerance: softmax denominator uses the EUP
    # approximate reciprocal.
    assert jnp.allclose(out, ref, atol=5e-3, rtol=5e-3), \
        float(jnp.abs(out - ref).max())

    print("KERNEL_OK")
</pallas_src>

<mosaic_0001>
module attributes {stable_mosaic.version = 11 : i64} {
  func.func @_attention_kernel(%arg0: i32, %arg1: memref<2x8x32xf32, #tpu.memory_space<vmem>>, %arg2: memref<32x64xf32, #tpu.memory_space<vmem>>, %arg3: memref<32x64xf32, #tpu.memory_space<vmem>>, %arg4: memref<32x64xf32, #tpu.memory_space<vmem>>, %arg5: memref<2x8x64xf32, #tpu.memory_space<vmem>>) attributes {dimension_semantics = [#tpu.dimension_semantics<parallel>], iteration_bounds = array<i64: 1>, scalar_prefetch = 0 : i64, scratch_operands = 0 : i64, tpu.core_type = #tpu.core_type<tc>, window_params = [{transform_indices = @transform_0, window_bounds = array<i64: 2, 8, 32>}, {pipeline_mode = #tpu.pipeline_mode<synchronous>, transform_indices = @transform_1, window_bounds = array<i64: 32, 64>}, {pipeline_mode = #tpu.pipeline_mode<synchronous>, transform_indices = @transform_2, window_bounds = array<i64: 32, 64>}, {pipeline_mode = #tpu.pipeline_mode<synchronous>, transform_indices = @transform_3, window_bounds = array<i64: 32, 64>}, {transform_indices = @transform_4, window_bounds = array<i64: 2, 8, 64>}]} {
    %c0 = arith.constant 0 : index
    %c0_0 = arith.constant 0 : index
    %c0_1 = arith.constant 0 : index
    %0 = vector.load %arg1[%c0, %c0_0, %c0_1] : memref<2x8x32xf32, #tpu.memory_space<vmem>>, vector<2x8x32xf32>
    %1 = vector.shape_cast %0 : vector<2x8x32xf32> to vector<16x32xf32>
    %c0_2 = arith.constant 0 : index
    %c0_3 = arith.constant 0 : index
    %2 = vector.load %arg2[%c0_2, %c0_3] : memref<32x64xf32, #tpu.memory_space<vmem>>, vector<32x64xf32>
    %cst = arith.constant dense<0.000000e+00> : vector<16x64xf32>
    %3 = tpu.matmul %1, %2, %cst {dimension_numbers = #tpu.dot_dimension_numbers<[1], [0], [0], [1], [0, 0, 1, 1], [], []>} : vector<16x32xf32>, vector<32x64xf32>, vector<16x64xf32> -> vector<16x64xf32>
    %4 = vector.shape_cast %3 : vector<16x64xf32> to vector<2x8x64xf32>
    %c0_4 = arith.constant 0 : index
    %c0_5 = arith.constant 0 : index
    %5 = vector.load %arg3[%c0_4, %c0_5] : memref<32x64xf32, #tpu.memory_space<vmem>>, vector<32x64xf32>
    %cst_6 = arith.constant dense<0.000000e+00> : vector<16x64xf32>
    %6 = tpu.matmul %1, %5, %cst_6 {dimension_numbers = #tpu.dot_dimension_numbers<[1], [0], [0], [1], [0, 0, 1, 1], [], []>} : vector<16x32xf32>, vector<32x64xf32>, vector<16x64xf32> -> vector<16x64xf32>
    %7 = vector.shape_cast %6 : vector<16x64xf32> to vector<2x8x64xf32>
    %8 = vector.extract_strided_slice %4 {offsets = [0, 0, 0], sizes = [2, 8, 32], strides = [1, 1, 1]} : vector<2x8x64xf32> to vector<2x8x32xf32>
    %9 = vector.extract_strided_slice %7 {offsets = [0, 0, 0], sizes = [2, 8, 32], strides = [1, 1, 1]} : vector<2x8x64xf32> to vector<2x8x32xf32>
    "tpu.trace_start"() <{level = 10 : i32, message = "byk,byq->bkq"}> : () -> ()
    %cst_7 = arith.constant dense<0.000000e+00> : vector<2x32x32xf32>
    %10 = tpu.matmul %9, %8, %cst_7 {dimension_numbers = #tpu.dot_dimension_numbers<[1], [1], [2], [2], [0, 0, 0, 2, 1, 2], [0], [0]>} : vector<2x8x32xf32>, vector<2x8x32xf32>, vector<2x32x32xf32> -> vector<2x32x32xf32>
    "tpu.trace_stop"() : () -> ()
    %cst_8 = arith.constant dense<0xFF800000> : vector<2x32xf32>
    %11 = vector.multi_reduction <maximumf>, %10, %cst_8 [2] : vector<2x32x32xf32> to vector<2x32xf32>
    %12 = vector.shape_cast %11 : vector<2x32xf32> to vector<2x32x1xf32>
    %13 = vector.broadcast %12 : vector<2x32x1xf32> to vector<2x32x32xf32>
    %14 = arith.subf %10, %13 : vector<2x32x32xf32>
    %15 = math.exp %14 : vector<2x32x32xf32>
    %cst_9 = arith.constant dense<0.000000e+00> : vector<2x32xf32>
    %16 = vector.multi_reduction <add>, %15, %cst_9 [2] : vector<2x32x32xf32> to vector<2x32xf32>
    %17 = vector.shape_cast %16 : vector<2x32xf32> to vector<2x32x1xf32>
    %18 = tpu.reciprocal %17 {approx = true} : vector<2x32x1xf32> -> vector<2x32x1xf32>
    %19 = vector.broadcast %18 : vector<2x32x1xf32> to vector<2x32x32xf32>
    %20 = arith.mulf %15, %19 : vector<2x32x32xf32>
    %21 = vector.extract_strided_slice %4 {offsets = [0, 0, 32], sizes = [2, 8, 32], strides = [1, 1, 1]} : vector<2x8x64xf32> to vector<2x8x32xf32>
    %22 = vector.extract_strided_slice %7 {offsets = [0, 0, 32], sizes = [2, 8, 32], strides = [1, 1, 1]} : vector<2x8x64xf32> to vector<2x8x32xf32>
    "tpu.trace_start"() <{level = 10 : i32, message = "byk,byq->bkq"}> : () -> ()
    %cst_10 = arith.constant dense<0.000000e+00> : vector<2x32x32xf32>
    %23 = tpu.matmul %22, %21, %cst_10 {dimension_numbers = #tpu.dot_dimension_numbers<[1], [1], [2], [2], [0, 0, 0, 2, 1, 2], [0], [0]>} : vector<2x8x32xf32>, vector<2x8x32xf32>, vector<2x32x32xf32> -> vector<2x32x32xf32>
    "tpu.trace_stop"() : () -> ()
    %cst_11 = arith.constant dense<0xFF800000> : vector<2x32xf32>
    %24 = vector.multi_reduction <maximumf>, %23, %cst_11 [2] : vector<2x32x32xf32> to vector<2x32xf32>
    %25 = vector.shape_cast %24 : vector<2x32xf32> to vector<2x32x1xf32>
    %26 = vector.broadcast %25 : vector<2x32x1xf32> to vector<2x32x32xf32>
    %27 = arith.subf %23, %26 : vector<2x32x32xf32>
    %28 = math.exp %27 : vector<2x32x32xf32>
    %cst_12 = arith.constant dense<0.000000e+00> : vector<2x32xf32>
    %29 = vector.multi_reduction <add>, %28, %cst_12 [2] : vector<2x32x32xf32> to vector<2x32xf32>
    %30 = vector.shape_cast %29 : vector<2x32xf32> to vector<2x32x1xf32>
    %31 = tpu.reciprocal %30 {approx = true} : vector<2x32x1xf32> -> vector<2x32x1xf32>
    %32 = vector.broadcast %31 : vector<2x32x1xf32> to vector<2x32x32xf32>
    %33 = arith.mulf %28, %32 : vector<2x32x32xf32>
    %c0_13 = arith.constant 0 : index
    %c0_14 = arith.constant 0 : index
    %34 = vector.load %arg4[%c0_13, %c0_14] : memref<32x64xf32, #tpu.memory_space<vmem>>, vector<32x64xf32>
    %cst_15 = arith.constant dense<0.000000e+00> : vector<16x64xf32>
    %35 = tpu.matmul %1, %34, %cst_15 {dimension_numbers = #tpu.dot_dimension_numbers<[1], [0], [0], [1], [0, 0, 1, 1], [], []>} : vector<16x32xf32>, vector<32x64xf32>, vector<16x64xf32> -> vector<16x64xf32>
    %36 = vector.shape_cast %35 : vector<16x64xf32> to vector<2x8x64xf32>
    %37 = vector.extract_strided_slice %36 {offsets = [0, 0, 0], sizes = [2, 8, 32], strides = [1, 1, 1]} : vector<2x8x64xf32> to vector<2x8x32xf32>
    "tpu.trace_start"() <{level = 10 : i32, message = "bsy,byq->bsq"}> : () -> ()
    %cst_16 = arith.constant dense<0.000000e+00> : vector<2x8x32xf32>
    %38 = tpu.matmul %37, %20, %cst_16 {dimension_numbers = #tpu.dot_dimension_numbers<[2], [1], [1], [2], [0, 0, 0, 1, 1, 2], [0], [0]>} : vector<2x8x32xf32>, vector<2x32x32xf32>, vector<2x8x32xf32> -> vector<2x8x32xf32>
    "tpu.trace_stop"() : () -> ()
    %39 = vector.extract_strided_slice %36 {offsets = [0, 0, 32], sizes = [2, 8, 32], strides = [1, 1, 1]} : vector<2x8x64xf32> to vector<2x8x32xf32>
    "tpu.trace_start"() <{level = 10 : i32, message = "bsy,byq->bsq"}> : () -> ()
    %cst_17 = arith.constant dense<0.000000e+00> : vector<2x8x32xf32>
    %40 = tpu.matmul %39, %33, %cst_17 {dimension_numbers = #tpu.dot_dimension_numbers<[2], [1], [1], [2], [0, 0, 0, 1, 1, 2], [0], [0]>} : vector<2x8x32xf32>, vector<2x32x32xf32>, vector<2x8x32xf32> -> vector<2x8x32xf32>
    "tpu.trace_stop"() : () -> ()
    %41 = tpu.concatenate %38, %40 in 2 : vector<2x8x32xf32>, vector<2x8x32xf32> -> vector<2x8x64xf32>
    %c0_18 = arith.constant 0 : index
    %c0_19 = arith.constant 0 : index
    %c0_20 = arith.constant 0 : index
    %42 = vector.load %arg5[%c0_18, %c0_19, %c0_20] : memref<2x8x64xf32, #tpu.memory_space<vmem>>, vector<2x8x64xf32>
    tpu.vector_store %arg5[%c0_18, %c0_19, %c0_20], %41 {strides = array<i32>} : memref<2x8x64xf32, #tpu.memory_space<vmem>>, vector<2x8x64xf32>,
    return
  }
  func.func @transform_0(%arg0: i32) -> (i32, i32, i32) {
    %c0_i32 = arith.constant 0 : i32
    %c0_i32_0 = arith.constant 0 : i32
    %c0_i32_1 = arith.constant 0 : i32
    return %arg0, %c0_i32, %c0_i32_0 : i32, i32, i32
  }
  func.func @transform_1(%arg0: i32) -> (i32, i32) {
    %c0_i32 = arith.constant 0 : i32
    %c0_i32_0 = arith.constant 0 : i32
    %c0_i32_1 = arith.constant 0 : i32
    return %c0_i32, %c0_i32_0 : i32, i32
  }
  func.func @transform_2(%arg0: i32) -> (i32, i32) {
    %c0_i32 = arith.constant 0 : i32
    %c0_i32_0 = arith.constant 0 : i32
    %c0_i32_1 = arith.constant 0 : i32
    return %c0_i32, %c0_i32_0 : i32, i32
  }
  func.func @transform_3(%arg0: i32) -> (i32, i32) {
    %c0_i32 = arith.constant 0 : i32
    %c0_i32_0 = arith.constant 0 : i32
    %c0_i32_1 = arith.constant 0 : i32
    return %c0_i32, %c0_i32_0 : i32, i32
  }
  func.func @transform_4(%arg0: i32) -> (i32, i32, i32) {
    %c0_i32 = arith.constant 0 : i32
    %c0_i32_0 = arith.constant 0 : i32
    %c0_i32_1 = arith.constant 0 : i32
    return %arg0, %c0_i32, %c0_i32_0 : i32, i32, i32
  }
}

</mosaic_0001>

<llo_original>
// kernel: tpu_custom_call.1
$region0: #{tpu_custom_call.1}
  #allocation0 [shape = 'u32[]', space=smem, size = 0x4, offset = 0x4, fixed_abs, tag = 'smem constant byte address 0x4 - core index']
  #allocation1 [shape = 'u32[72,128]{1,0:T(1,128)}', space=vmem, size = 0x9000, scoped, tag = 'internal scratch']
  %s0 = inlined_call_operand.hbm [shape: f32[2,8,32], index: 0, kind: input, shape index: {}]
  %s1 = inlined_call_operand.hbm [shape: f32[32,64], index: 1, kind: input, shape index: {}]
  %s2 = inlined_call_operand.hbm [shape: f32[32,64], index: 2, kind: input, shape index: {}]
  %s3 = inlined_call_operand.hbm [shape: f32[32,64], index: 3, kind: input, shape index: {}]
  %s4 = inlined_call_operand.hbm [shape: f32[2,8,64], index: 4, kind: output, shape index: {}]
  %s5 = sld [smem:[#allocation0]]
  $region42: #{tpu_custom_call.1} parent=0
    _
  %s7 = ssub.s32 1, %s5
  %s8 = scalar_select 0, %s7, %s5
  $region1: #{tpu_custom_call.1} parent=0
    #allocation2 [shape = 'u8[8192]{0}', space=vmem, size = 0x2000, scoped, tag = 'input window, operand 0, single buffered']
    #allocation3 [shape = 's32[1]{0}', space=sflag, size = 0x4, scoped, tag = 'scoped memory for tpu_custom_call.1']
    #allocation4 [shape = 's32[1]{0}', space=sflag, size = 0x4, scoped, tag = 'scoped memory for tpu_custom_call.1']
    #allocation5 [shape = 'u8[16384]{0}', space=vmem, size = 0x4000, scoped, tag = 'input window, operand 1, single buffered']
    #allocation6 [shape = 's32[1]{0}', space=sflag, size = 0x4, scoped, tag = 'scoped memory for tpu_custom_call.1']
    #allocation7 [shape = 'u8[16384]{0}', space=vmem, size = 0x4000, scoped, tag = 'input window, operand 2, single buffered']
    #allocation8 [shape = 'u8[16384]{0}', space=vmem, size = 0x4000, scoped, tag = 'input window, operand 3, single buffered']
    #allocation9 [shape = 's32[1]{0}', space=sflag, size = 0x4, scoped, tag = 'scoped memory for tpu_custom_call.1']
    #allocation10 [shape = 'u8[8192]{0}', space=vmem, size = 0x2000, scoped, tag = 'output window, operand 0, single buffered']
    %9 = vsyncpa [#allocation3], 0
    %10 = vsyncpa [#allocation6], 0
    %11 = vsyncpa [#allocation9], 0
    %12 = vsyncpa [#allocation4], 0
    // Predicated region
    $region2: #{tpu_custom_call.1} parent=1 // pred_check
      _
    $region3: #{tpu_custom_call.1} parent=1 // pred_check_branch
      %14 = sbr.rel (0) target = $region5
    $region4: #{tpu_custom_call.1} parent=1 // pred_region
      %16 = vsyncadd [#allocation3], 0
      %s17 = sshll.u32 %s0, 4
      %s18 = int_to_ptr.hbm [resolvable:$true] %s17
      %s19 = sshll.u32 [#allocation2], 4
      %s20 = int_to_ptr.vmem [resolvable:$true] %s19
      %25 = dma.hbm_to_vmem [thread:$0]  %s18, 256, %s20, [#allocation3], 128, 128, 8
    $region5: #{tpu_custom_call.1} parent=1 // pred_fallthru
      _
    // Predicated region
    $region6: #{tpu_custom_call.1} parent=1 // pred_check
      _
    $region7: #{tpu_custom_call.1} parent=1 // pred_check_branch
      %27 = sbr.rel (0) target = $region9
    $region8: #{tpu_custom_call.1} parent=1 // pred_region
      %29 = vsyncadd [#allocation6], 0
      %s30 = sshll.u32 %s1, 4
      %s31 = int_to_ptr.hbm [resolvable:$true] %s30
      %s32 = sshll.u32 [#allocation5], 4
      %s33 = int_to_ptr.vmem [resolvable:$true] %s32
      %38 = dma.hbm_to_vmem [thread:$0]  %s31, 512, %s33, [#allocation6], 128, 128, 8
    $region9: #{tpu_custom_call.1} parent=1 // pred_fallthru
      _
    // Predicated region
    $region10: #{tpu_custom_call.1} parent=1 // pred_check
      _
    $region11: #{tpu_custom_call.1} parent=1 // pred_check_branch
      %40 = sbr.rel (0) target = $region13
    $region12: #{tpu_custom_call.1} parent=1 // pred_region
      %42 = vsyncadd [#allocation6], 0
      %s43 = sshll.u32 %s2, 4
      %s44 = int_to_ptr.hbm [resolvable:$true] %s43
      %s45 = sshll.u32 [#allocation7], 4
      %s46 = int_to_ptr.vmem [resolvable:$true] %s45
      %51 = dma.hbm_to_vmem [thread:$0]  %s44, 512, %s46, [#allocation6], 128, 128, 8
    $region13: #{tpu_custom_call.1} parent=1 // pred_fallthru
      _
    // Predicated region
    $region14: #{tpu_custom_call.1} parent=1 // pred_check
      _
    $region15: #{tpu_custom_call.1} parent=1 // pred_check_branch
      %53 = sbr.rel (0) target = $region17
    $region16: #{tpu_custom_call.1} parent=1 // pred_region
      %55 = vsyncadd [#allocation9], 0
      %s56 = sshll.u32 %s3, 4
      %s57 = int_to_ptr.hbm [resolvable:$true] %s56
      %s58 = sshll.u32 [#allocation8], 4
      %s59 = int_to_ptr.vmem [resolvable:$true] %s58
      %64 = dma.hbm_to_vmem [thread:$0]  %s57, 512, %s59, [#allocation9], 128, 128, 8
    $region17: #{tpu_custom_call.1} parent=1 // pred_fallthru
      _
    // Predicated region
    $region18: #{tpu_custom_call.1} parent=1 // pred_check
      _
    $region19: #{tpu_custom_call.1} parent=1 // pred_check_branch
      %66 = sbr.rel (0) target = $region21
    $region20: #{tpu_custom_call.1} parent=1 // pred_region
      %68 = dma.done [#allocation3], 256
    $region21: #{tpu_custom_call.1} parent=1 // pred_fallthru
      _
    // Predicated region
    $region22: #{tpu_custom_call.1} parent=1 // pred_check
      _
    $region23: #{tpu_custom_call.1} parent=1 // pred_check_branch
      %70 = sbr.rel (0) target = $region25
    $region24: #{tpu_custom_call.1} parent=1 // pred_region
      %72 = dma.done [#allocation6], 512
    $region25: #{tpu_custom_call.1} parent=1 // pred_fallthru
      _
    // Predicated region
    $region26: #{tpu_custom_call.1} parent=1 // pred_check
      _
    $region27: #{tpu_custom_call.1} parent=1 // pred_check_branch
      %74 = sbr.rel (0) target = $region29
    $region28: #{tpu_custom_call.1} parent=1 // pred_region
      %76 = dma.done [#allocation6], 512
    $region29: #{tpu_custom_call.1} parent=1 // pred_fallthru
      _
    // Predicated region
    $region30: #{tpu_custom_call.1} parent=1 // pred_check
      _
    $region31: #{tpu_custom_call.1} parent=1 // pred_check_branch
      %78 = sbr.rel (0) target = $region33
    $region32: #{tpu_custom_call.1} parent=1 // pred_region
      %80 = dma.done [#allocation9], 512
    $region33: #{tpu_custom_call.1} parent=1 // pred_fallthru
      _
    %v81 = vld [vmem:[#allocation2] sm:$0xff]
    %v82 = vld [vmem:[#allocation2 + $0x8] sm:$0xff]
    %v83 = vld [vmem:[#allocation5] sm:$0xff]
    %v84 = vld [vmem:[#allocation5 + $0x8] sm:$0xff]
    %v85 = vld [vmem:[#allocation5 + $0x10] sm:$0xff]
    %v86 = vld [vmem:[#allocation5 + $0x18] sm:$0xff]
    %vm87 = vcmask 261120
    %v89 = vsel %vm87, %v81, 0
    %v92 = vsel %vm87, %v82, 0
    %94 = vmatpush.msra.mxu0 0.0
    %95 = vmatpush.msra.mxu0 0.0
    %96 = vmatpush.msra.mxu0 0.0
    %97 = vmatpush.msra.mxu0 0.0
    %98 = vmatpush.msra.mxu0 0.0
    %99 = vmatpush.msra.mxu0 0.0
    %100 = vmatpush.msra.mxu0 0.0
    %101 = vmatpush.msra.mxu0 0.0
    %102 = vmatpush.msra.mxu0 0.0
    %103 = vmatpush.msra.mxu0 0.0
    %104 = vmatpush.msra.mxu0 0.0
    %105 = vmatpush.msra.mxu0 0.0
    %106 = vmatpush.msra.mxu0 %v86
    %107 = vmatpush.msra.mxu0 %v85
    %108 = vmatpush.msra.mxu0 %v84
    %109 = vmatpush.msra.mxu0 %v83
    %110 = vmatmul.f32.gmra.mxu0 %v89
    %v111 = vpop.f32.mrf.mxu0
    %v112 = vadd.f32 0.0, %v111
    %113 = vmatmul.f32.gmra.mxu0 %v92
    %v114 = vpop.f32.mrf.mxu0
    %v115 = vadd.f32 0.0, %v114
    %116 = vdwg.mxu0
    %v117 = vld [vmem:[#allocation7] sm:$0xff]
    %v118 = vld [vmem:[#allocation7 + $0x8] sm:$0xff]
    %v119 = vld [vmem:[#allocation7 + $0x10] sm:$0xff]
    %v120 = vld [vmem:[#allocation7 + $0x18] sm:$0xff]
    %121 = vmatpush.msra.mxu0 0.0
    %122 = vmatpush.msra.mxu0 0.0
    %123 = vmatpush.msra.mxu0 0.0
    %124 = vmatpush.msra.mxu0 0.0
    %125 = vmatpush.msra.mxu0 0.0
    %126 = vmatpush.msra.mxu0 0.0
    %127 = vmatpush.msra.mxu0 0.0
    %128 = vmatpush.msra.mxu0 0.0
    %129 = vmatpush.msra.mxu0 0.0
    %130 = vmatpush.msra.mxu0 0.0
    %131 = vmatpush.msra.mxu0 0.0
    %132 = vmatpush.msra.mxu0 0.0
    %133 = vmatpush.msra.mxu0 %v120
    %134 = vmatpush.msra.mxu0 %v119
    %135 = vmatpush.msra.mxu0 %v118
    %136 = vmatpush.msra.mxu0 %v117
    %137 = vmatmul.f32.gmra.mxu0 %v89
    %v138 = vpop.f32.mrf.mxu0
    %v139 = vadd.f32 0.0, %v138
    %140 = vmatmul.f32.gmra.mxu0 %v92
    %v141 = vpop.f32.mrf.mxu0
    %v142 = vadd.f32 0.0, %v141
    %143 = vdwg.mxu0
    %144 = vxpose.xlu0.b32.start [1/16] %v139, 128
    %145 = vxpose.xlu0.b32.cont [2/16] 0.0, 128
    %146 = vxpose.xlu0.b32.cont [3/16] 0.0, 128
    %147 = vxpose.xlu0.b32.cont [4/16] 0.0, 128
    %148 = vxpose.xlu0.b32.cont [5/16] 0.0, 128
    %149 = vxpose.xlu0.b32.cont [6/16] 0.0, 128
    %150 = vxpose.xlu0.b32.cont [7/16] 0.0, 128
    %151 = vxpose.xlu0.b32.cont [8/16] 0.0, 128
    %152 = vxpose.xlu0.b32.cont [9/16] 0.0, 128
    %153 = vxpose.xlu0.b32.cont [10/16] 0.0, 128
    %154 = vxpose.xlu0.b32.cont [11/16] 0.0, 128
    %155 = vxpose.xlu0.b32.cont [12/16] 0.0, 128
    %156 = vxpose.xlu0.b32.cont [13/16] 0.0, 128
    %157 = vxpose.xlu0.b32.cont [14/16] 0.0, 128
    %158 = vxpose.xlu0.b32.cont [15/16] 0.0, 128
    %159 = vxpose.xlu0.b32.end [16/16] 0.0, 128
    %v160 = vpop.trf.xlu0
    %v161 = vpop.trf.xlu0
    %v162 = vpop.trf.xlu0
    %v163 = vpop.trf.xlu0
    %v164 = vpop.trf.xlu0
    %v165 = vpop.trf.xlu0
    %v166 = vpop.trf.xlu0
    %v167 = vpop.trf.xlu0
    %v168 = vpop.trf.xlu0
    %v169 = vpop.trf.xlu0
    %v170 = vpop.trf.xlu0
    %v171 = vpop.trf.xlu0
    %v172 = vpop.trf.xlu0
    %v173 = vpop.trf.xlu0
    %v174 = vpop.trf.xlu0
    %v175 = vpop.trf.xlu0
    %vm176 = vcmask 64512
    %v178 = vsel %vm176, %v160, 0
    %v181 = vsel %vm176, %v161, 0
    %v184 = vsel %vm176, %v162, 0
    %v187 = vsel %vm176, %v163, 0
    %189 = vmatpush.msra.mxu0 0.0
    %190 = vmatpush.msra.mxu0 0.0
    %191 = vmatpush.msra.mxu0 0.0
    %192 = vmatpush.msra.mxu0 0.0
    %193 = vmatpush.msra.mxu0 0.0
    %194 = vmatpush.msra.mxu0 0.0
    %195 = vmatpush.msra.mxu0 0.0
    %196 = vmatpush.msra.mxu0 0.0
    %197 = vmatpush.msra.mxu0 0.0
    %198 = vmatpush.msra.mxu0 0.0
    %199 = vmatpush.msra.mxu0 0.0
    %200 = vmatpush.msra.mxu0 0.0
    %201 = vmatpush.msra.mxu0 0.0
    %202 = vmatpush.msra.mxu0 0.0
    %203 = vmatpush.msra.mxu0 0.0
    %204 = vmatpush.msra.mxu0 %v112
    %205 = vmatmul.f32.gmra.mxu0 %v178
    %v206 = vpop.f32.mrf.mxu0
    %v207 = vadd.f32 0.0, %v206
    %208 = vmatmul.f32.gmra.mxu0 %v181
    %v209 = vpop.f32.mrf.mxu0
    %v210 = vadd.f32 0.0, %v209
    %211 = vmatmul.f32.gmra.mxu0 %v184
    %v212 = vpop.f32.mrf.mxu0
    %v213 = vadd.f32 0.0, %v212
    %214 = vmatmul.f32.gmra.mxu0 %v187
    %v215 = vpop.f32.mrf.mxu0
    %v216 = vadd.f32 0.0, %v215
    %217 = vdwg.mxu0
    %218 = vxpose.xlu0.b32.start [1/16] %v142, 128
    %219 = vxpose.xlu0.b32.cont [2/16] 0.0, 128
    %220 = vxpose.xlu0.b32.cont [3/16] 0.0, 128
    %221 = vxpose.xlu0.b32.cont [4/16] 0.0, 128
    %222 = vxpose.xlu0.b32.cont [5/16] 0.0, 128
    %223 = vxpose.xlu0.b32.cont [6/16] 0.0, 128
    %224 = vxpose.xlu0.b32.cont [7/16] 0.0, 128
    %225 = vxpose.xlu0.b32.cont [8/16] 0.0, 128
    %226 = vxpose.xlu0.b32.cont [9/16] 0.0, 128
    %227 = vxpose.xlu0.b32.cont [10/16] 0.0, 128
    %228 = vxpose.xlu0.b32.cont [11/16] 0.0, 128
    %229 = vxpose.xlu0.b32.cont [12/16] 0.0, 128
    %230 = vxpose.xlu0.b32.cont [13/16] 0.0, 128
    %231 = vxpose.xlu0.b32.cont [14/16] 0.0, 128
    %232 = vxpose.xlu0.b32.cont [15/16] 0.0, 128
    %233 = vxpose.xlu0.b32.end [16/16] 0.0, 128
    %v234 = vpop.trf.xlu0
    %v235 = vpop.trf.xlu0
    %v236 = vpop.trf.xlu0
    %v237 = vpop.trf.xlu0
    %v238 = vpop.trf.xlu0
    %v239 = vpop.trf.xlu0
    %v240 = vpop.trf.xlu0
    %v241 = vpop.trf.xlu0
    %v242 = vpop.trf.xlu0
    %v243 = vpop.trf.xlu0
    %v244 = vpop.trf.xlu0
    %v245 = vpop.trf.xlu0
    %v246 = vpop.trf.xlu0
    %v247 = vpop.trf.xlu0
    %v248 = vpop.trf.xlu0
    %v249 = vpop.trf.xlu0
    %v251 = vsel %vm176, %v234, 0
    %v254 = vsel %vm176, %v235, 0
    %v257 = vsel %vm176, %v236, 0
    %v260 = vsel %vm176, %v237, 0
    %262 = vmatpush.msra.mxu0 0.0
    %263 = vmatpush.msra.mxu0 0.0
    %264 = vmatpush.msra.mxu0 0.0
    %265 = vmatpush.msra.mxu0 0.0
    %266 = vmatpush.msra.mxu0 0.0
    %267 = vmatpush.msra.mxu0 0.0
    %268 = vmatpush.msra.mxu0 0.0
    %269 = vmatpush.msra.mxu0 0.0
    %270 = vmatpush.msra.mxu0 0.0
    %271 = vmatpush.msra.mxu0 0.0
    %272 = vmatpush.msra.mxu0 0.0
    %273 = vmatpush.msra.mxu0 0.0
    %274 = vmatpush.msra.mxu0 0.0
    %275 = vmatpush.msra.mxu0 0.0
    %276 = vmatpush.msra.mxu0 0.0
    %277 = vmatpush.msra.mxu0 %v115
    %278 = vmatmul.f32.gmra.mxu0 %v251
    %v279 = vpop.f32.mrf.mxu0
    %v280 = vadd.f32 0.0, %v279
    %281 = vmatmul.f32.gmra.mxu0 %v254
    %v282 = vpop.f32.mrf.mxu0
    %v283 = vadd.f32 0.0, %v282
    %284 = vmatmul.f32.gmra.mxu0 %v257
    %v285 = vpop.f32.mrf.mxu0
    %v286 = vadd.f32 0.0, %v285
    %287 = vmatmul.f32.gmra.mxu0 %v260
    %v288 = vpop.f32.mrf.mxu0
    %v289 = vadd.f32 0.0, %v288
    %290 = vdwg.mxu0
    %v291 = vsel %vm87, %v207, -inf
    %292 = vmax.xlane.f32.xlu0 %v291
    %v293 = vpop.xlane.xlu0 %292
    %v294 = vsel %vm87, %v210, -inf
    %295 = vmax.xlane.f32.xlu0 %v294
    %v296 = vpop.xlane.xlu0 %295
    %v297 = vsel %vm87, %v213, -inf
    %298 = vmax.xlane.f32.xlu0 %v297
    %v299 = vpop.xlane.xlu0 %298
    %v300 = vsel %vm87, %v216, -inf
    %301 = vmax.xlane.f32.xlu0 %v300
    %v302 = vpop.xlane.xlu0 %301
    %v303 = vsel %vm87, %v280, -inf
    %304 = vmax.xlane.f32.xlu0 %v303
    %v305 = vpop.xlane.xlu0 %304
    %v306 = vsel %vm87, %v283, -inf
    %307 = vmax.xlane.f32.xlu0 %v306
    %v308 = vpop.xlane.xlu0 %307
    %v309 = vsel %vm87, %v286, -inf
    %310 = vmax.xlane.f32.xlu0 %v309
    %v311 = vpop.xlane.xlu0 %310
    %v312 = vsel %vm87, %v289, -inf
    %313 = vmax.xlane.f32.xlu0 %v312
    %v314 = vpop.xlane.xlu0 %313
    %v315 = vsub.f32 %v207, %v293
    %v316 = vsub.f32 %v210, %v296
    %v317 = vsub.f32 %v213, %v299
    %v318 = vsub.f32 %v216, %v302
    %v319 = vsub.f32 %v280, %v305
    %v320 = vsub.f32 %v283, %v308
    %v321 = vsub.f32 %v286, %v311
    %v322 = vsub.f32 %v289, %v314
    %v323 = vmul.f32 %v315, 1.442695
    %v324 = vpow.pop %v323
    %v325 = vmul.f32 %v316, 1.442695
    %v326 = vpow.pop %v325
    %v327 = vmul.f32 %v317, 1.442695
    %v328 = vpow.pop %v327
    %v329 = vmul.f32 %v318, 1.442695
    %v330 = vpow.pop %v329
    %v331 = vmul.f32 %v319, 1.442695
    %v332 = vpow.pop %v331
    %v333 = vmul.f32 %v320, 1.442695
    %v334 = vpow.pop %v333
    %v335 = vmul.f32 %v321, 1.442695
    %v336 = vpow.pop %v335
    %v337 = vmul.f32 %v322, 1.442695
    %v338 = vpow.pop %v337
    %v339 = vsel %vm87, %v324, 0.0
    %340 = vadd.xlane.f32.xlu0 %v339
    %v341 = vpop.xlane.xlu0 %340
    %v342 = vsel %vm87, %v326, 0.0
    %343 = vadd.xlane.f32.xlu0 %v342
    %v344 = vpop.xlane.xlu0 %343
    %v345 = vsel %vm87, %v328, 0.0
    %346 = vadd.xlane.f32.xlu0 %v345
    %v347 = vpop.xlane.xlu0 %346
    %v348 = vsel %vm87, %v330, 0.0
    %349 = vadd.xlane.f32.xlu0 %v348
    %v350 = vpop.xlane.xlu0 %349
    %v351 = vsel %vm87, %v332, 0.0
    %352 = vadd.xlane.f32.xlu0 %v351
    %v353 = vpop.xlane.xlu0 %352
    %v354 = vsel %vm87, %v334, 0.0
    %355 = vadd.xlane.f32.xlu0 %v354
    %v356 = vpop.xlane.xlu0 %355
    %v357 = vsel %vm87, %v336, 0.0
    %358 = vadd.xlane.f32.xlu0 %v357
    %v359 = vpop.xlane.xlu0 %358
    %v360 = vsel %vm87, %v338, 0.0
    %361 = vadd.xlane.f32.xlu0 %v360
    %v362 = vpop.xlane.xlu0 %361
    %v363 = vrcp.pop %v341
    %v364 = vrcp.pop %v344
    %v365 = vrcp.pop %v347
    %v366 = vrcp.pop %v350
    %v367 = vrcp.pop %v353
    %v368 = vrcp.pop %v356
    %v369 = vrcp.pop %v359
    %v370 = vrcp.pop %v362
    %v371 = vmul.f32 %v324, %v363
    %v372 = vmul.f32 %v326, %v364
    %v373 = vmul.f32 %v328, %v365
    %v374 = vmul.f32 %v330, %v366
    %v375 = vmul.f32 %v332, %v367
    %v376 = vmul.f32 %v334, %v368
    %v377 = vmul.f32 %v336, %v369
    %v378 = vmul.f32 %v338, %v370
    %380 = vrot.lane.b32.xlu0 %v139, 96
    %v381 = vpop.permute.xlu0 %380
    %383 = vxpose.xlu0.b32.start [1/16] %v381, 128
    %384 = vxpose.xlu0.b32.cont [2/16] 0.0, 128
    %385 = vxpose.xlu0.b32.cont [3/16] 0.0, 128
    %386 = vxpose.xlu0.b32.cont [4/16] 0.0, 128
    %387 = vxpose.xlu0.b32.cont [5/16] 0.0, 128
    %388 = vxpose.xlu0.b32.cont [6/16] 0.0, 128
    %389 = vxpose.xlu0.b32.cont [7/16] 0.0, 128
    %390 = vxpose.xlu0.b32.cont [8/16] 0.0, 128
    %391 = vxpose.xlu0.b32.cont [9/16] 0.0, 128
    %392 = vxpose.xlu0.b32.cont [10/16] 0.0, 128
    %393 = vxpose.xlu0.b32.cont [11/16] 0.0, 128
    %394 = vxpose.xlu0.b32.cont [12/16] 0.0, 128
    %395 = vxpose.xlu0.b32.cont [13/16] 0.0, 128
    %396 = vxpose.xlu0.b32.cont [14/16] 0.0, 128
    %397 = vxpose.xlu0.b32.cont [15/16] 0.0, 128
    %398 = vxpose.xlu0.b32.end [16/16] 0.0, 128
    %v399 = vpop.trf.xlu0
    %v400 = vpop.trf.xlu0
    %v401 = vpop.trf.xlu0
    %v402 = vpop.trf.xlu0
    %v403 = vpop.trf.xlu0
    %v404 = vpop.trf.xlu0
    %v405 = vpop.trf.xlu0
    %v406 = vpop.trf.xlu0
    %v407 = vpop.trf.xlu0
    %v408 = vpop.trf.xlu0
    %v409 = vpop.trf.xlu0
    %v410 = vpop.trf.xlu0
    %v411 = vpop.trf.xlu0
    %v412 = vpop.trf.xlu0
    %v413 = vpop.trf.xlu0
    %v414 = vpop.trf.xlu0
    %416 = vrot.lane.b32.xlu0 %v112, 96
    %v417 = vpop.permute.xlu0 %416
    %v420 = vsel %vm176, %v399, 0
    %v423 = vsel %vm176, %v400, 0
    %v426 = vsel %vm176, %v401, 0
    %v429 = vsel %vm176, %v402, 0
    %431 = vmatpush.msra.mxu0 0.0
    %432 = vmatpush.msra.mxu0 0.0
    %433 = vmatpush.msra.mxu0 0.0
    %434 = vmatpush.msra.mxu0 0.0
    %435 = vmatpush.msra.mxu0 0.0
    %436 = vmatpush.msra.mxu0 0.0
    %437 = vmatpush.msra.mxu0 0.0
    %438 = vmatpush.msra.mxu0 0.0
    %439 = vmatpush.msra.mxu0 0.0
    %440 = vmatpush.msra.mxu0 0.0
    %441 = vmatpush.msra.mxu0 0.0
    %442 = vmatpush.msra.mxu0 0.0
    %443 = vmatpush.msra.mxu0 0.0
    %444 = vmatpush.msra.mxu0 0.0
    %445 = vmatpush.msra.mxu0 0.0
    %446 = vmatpush.msra.mxu0 %v417
    %447 = vmatmul.f32.gmra.mxu0 %v420
    %v448 = vpop.f32.mrf.mxu0
    %v449 = vadd.f32 0.0, %v448
    %450 = vmatmul.f32.gmra.mxu0 %v423
    %v451 = vpop.f32.mrf.mxu0
    %v452 = vadd.f32 0.0, %v451
    %453 = vmatmul.f32.gmra.mxu0 %v426
    %v454 = vpop.f32.mrf.mxu0
    %v455 = vadd.f32 0.0, %v454
    %456 = vmatmul.f32.gmra.mxu0 %v429
    %v457 = vpop.f32.mrf.mxu0
    %v458 = vadd.f32 0.0, %v457
    %459 = vdwg.mxu0
    %461 = vrot.lane.b32.xlu0 %v142, 96
    %v462 = vpop.permute.xlu0 %461
    %464 = vxpose.xlu0.b32.start [1/16] %v462, 128
    %465 = vxpose.xlu0.b32.cont [2/16] 0.0, 128
    %466 = vxpose.xlu0.b32.cont [3/16] 0.0, 128
    %467 = vxpose.xlu0.b32.cont [4/16] 0.0, 128
    %468 = vxpose.xlu0.b32.cont [5/16] 0.0, 128
    %469 = vxpose.xlu0.b32.cont [6/16] 0.0, 128
    %470 = vxpose.xlu0.b32.cont [7/16] 0.0, 128
    %471 = vxpose.xlu0.b32.cont [8/16] 0.0, 128
    %472 = vxpose.xlu0.b32.cont [9/16] 0.0, 128
    %473 = vxpose.xlu0.b32.cont [10/16] 0.0, 128
    %474 = vxpose.xlu0.b32.cont [11/16] 0.0, 128
    %475 = vxpose.xlu0.b32.cont [12/16] 0.0, 128
    %476 = vxpose.xlu0.b32.cont [13/16] 0.0, 128
    %477 = vxpose.xlu0.b32.cont [14/16] 0.0, 128
    %478 = vxpose.xlu0.b32.cont [15/16] 0.0, 128
    %479 = vxpose.xlu0.b32.end [16/16] 0.0, 128
    %v480 = vpop.trf.xlu0
    %v481 = vpop.trf.xlu0
    %v482 = vpop.trf.xlu0
    %v483 = vpop.trf.xlu0
    %v484 = vpop.trf.xlu0
    %v485 = vpop.trf.xlu0
    %v486 = vpop.trf.xlu0
    %v487 = vpop.trf.xlu0
    %v488 = vpop.trf.xlu0
    %v489 = vpop.trf.xlu0
    %v490 = vpop.trf.xlu0
    %v491 = vpop.trf.xlu0
    %v492 = vpop.trf.xlu0
    %v493 = vpop.trf.xlu0
    %v494 = vpop.trf.xlu0
    %v495 = vpop.trf.xlu0
    %497 = vrot.lane.b32.xlu0 %v115, 96
    %v498 = vpop.permute.xlu0 %497
    %v501 = vsel %vm176, %v480, 0
    %v504 = vsel %vm176, %v481, 0
    %v507 = vsel %vm176, %v482, 0
    %v510 = vsel %vm176, %v483, 0
    %512 = vmatpush.msra.mxu0 0.0
    %513 = vmatpush.msra.mxu0 0.0
    %514 = vmatpush.msra.mxu0 0.0
    %515 = vmatpush.msra.mxu0 0.0
    %516 = vmatpush.msra.mxu0 0.0
    %517 = vmatpush.msra.mxu0 0.0
    %518 = vmatpush.msra.mxu0 0.0
    %519 = vmatpush.msra.mxu0 0.0
    %520 = vmatpush.msra.mxu0 0.0
    %521 = vmatpush.msra.mxu0 0.0
    %522 = vmatpush.msra.mxu0 0.0
    %523 = vmatpush.msra.mxu0 0.0
    %524 = vmatpush.msra.mxu0 0.0
    %525 = vmatpush.msra.mxu0 0.0
    %526 = vmatpush.msra.mxu0 0.0
    %527 = vmatpush.msra.mxu0 %v498
    %528 = vmatmul.f32.gmra.mxu0 %v501
    %v529 = vpop.f32.mrf.mxu0
    %v530 = vadd.f32 0.0, %v529
    %531 = vmatmul.f32.gmra.mxu0 %v504
    %v532 = vpop.f32.mrf.mxu0
    %v533 = vadd.f32 0.0, %v532
    %534 = vmatmul.f32.gmra.mxu0 %v507
    %v535 = vpop.f32.mrf.mxu0
    %v536 = vadd.f32 0.0, %v535
    %537 = vmatmul.f32.gmra.mxu0 %v510
    %v538 = vpop.f32.mrf.mxu0
    %v539 = vadd.f32 0.0, %v538
    %540 = vdwg.mxu0
    %v541 = vsel %vm87, %v449, -inf
    %542 = vmax.xlane.f32.xlu0 %v541
    %v543 = vpop.xlane.xlu0 %542
    %v544 = vsel %vm87, %v452, -inf
    %545 = vmax.xlane.f32.xlu0 %v544
    %v546 = vpop.xlane.xlu0 %545
    %v547 = vsel %vm87, %v455, -inf
    %548 = vmax.xlane.f32.xlu0 %v547
    %v549 = vpop.xlane.xlu0 %548
    %v550 = vsel %vm87, %v458, -inf
    %551 = vmax.xlane.f32.xlu0 %v550
    %v552 = vpop.xlane.xlu0 %551
    %v553 = vsel %vm87, %v530, -inf
    %554 = vmax.xlane.f32.xlu0 %v553
    %v555 = vpop.xlane.xlu0 %554
    %v556 = vsel %vm87, %v533, -inf
    %557 = vmax.xlane.f32.xlu0 %v556
    %v558 = vpop.xlane.xlu0 %557
    %v559 = vsel %vm87, %v536, -inf
    %560 = vmax.xlane.f32.xlu0 %v559
    %v561 = vpop.xlane.xlu0 %560
    %v562 = vsel %vm87, %v539, -inf
    %563 = vmax.xlane.f32.xlu0 %v562
    %v564 = vpop.xlane.xlu0 %563
    %v565 = vsub.f32 %v449, %v543
    %v566 = vsub.f32 %v452, %v546
    %v567 = vsub.f32 %v455, %v549
    %v568 = vsub.f32 %v458, %v552
    %v569 = vsub.f32 %v530, %v555
    %v570 = vsub.f32 %v533, %v558
    %v571 = vsub.f32 %v536, %v561
    %v572 = vsub.f32 %v539, %v564
    %v573 = vmul.f32 %v565, 1.442695
    %v574 = vpow.pop %v573
    %v575 = vmul.f32 %v566, 1.442695
    %v576 = vpow.pop %v575
    %v577 = vmul.f32 %v567, 1.442695
    %v578 = vpow.pop %v577
    %v579 = vmul.f32 %v568, 1.442695
    %v580 = vpow.pop %v579
    %v581 = vmul.f32 %v569, 1.442695
    %v582 = vpow.pop %v581
    %v583 = vmul.f32 %v570, 1.442695
    %v584 = vpow.pop %v583
    %v585 = vmul.f32 %v571, 1.442695
    %v586 = vpow.pop %v585
    %v587 = vmul.f32 %v572, 1.442695
    %v588 = vpow.pop %v587
    %v589 = vsel %vm87, %v574, 0.0
    %590 = vadd.xlane.f32.xlu0 %v589
    %v591 = vpop.xlane.xlu0 %590
    %v592 = vsel %vm87, %v576, 0.0
    %593 = vadd.xlane.f32.xlu0 %v592
    %v594 = vpop.xlane.xlu0 %593
    %v595 = vsel %vm87, %v578, 0.0
    %596 = vadd.xlane.f32.xlu0 %v595
    %v597 = vpop.xlane.xlu0 %596
    %v598 = vsel %vm87, %v580, 0.0
    %599 = vadd.xlane.f32.xlu0 %v598
    %v600 = vpop.xlane.xlu0 %599
    %v601 = vsel %vm87, %v582, 0.0
    %602 = vadd.xlane.f32.xlu0 %v601
    %v603 = vpop.xlane.xlu0 %602
    %v604 = vsel %vm87, %v584, 0.0
    %605 = vadd.xlane.f32.xlu0 %v604
    %v606 = vpop.xlane.xlu0 %605
    %v607 = vsel %vm87, %v586, 0.0
    %608 = vadd.xlane.f32.xlu0 %v607
    %v609 = vpop.xlane.xlu0 %608
    %v610 = vsel %vm87, %v588, 0.0
    %611 = vadd.xlane.f32.xlu0 %v610
    %v612 = vpop.xlane.xlu0 %611
    %v613 = vrcp.pop %v591
    %v614 = vrcp.pop %v594
    %v615 = vrcp.pop %v597
    %v616 = vrcp.pop %v600
    %v617 = vrcp.pop %v603
    %v618 = vrcp.pop %v606
    %v619 = vrcp.pop %v609
    %v620 = vrcp.pop %v612
    %v621 = vmul.f32 %v574, %v613
    %v622 = vmul.f32 %v576, %v614
    %v623 = vmul.f32 %v578, %v615
    %v624 = vmul.f32 %v580, %v616
    %v625 = vmul.f32 %v582, %v617
    %v626 = vmul.f32 %v584, %v618
    %v627 = vmul.f32 %v586, %v619
    %v628 = vmul.f32 %v588, %v620
    %v629 = vld [vmem:[#allocation8] sm:$0xff]
    %v630 = vld [vmem:[#allocation8 + $0x8] sm:$0xff]
    %v631 = vld [vmem:[#allocation8 + $0x10] sm:$0xff]
    %v632 = vld [vmem:[#allocation8 + $0x18] sm:$0xff]
    %633 = vmatpush.msra.mxu0 0.0
    %634 = vmatpush.msra.mxu0 0.0
    %635 = vmatpush.msra.mxu0 0.0
    %636 = vmatpush.msra.mxu0 0.0
    %637 = vmatpush.msra.mxu0 0.0
    %638 = vmatpush.msra.mxu0 0.0
    %639 = vmatpush.msra.mxu0 0.0
    %640 = vmatpush.msra.mxu0 0.0
    %641 = vmatpush.msra.mxu0 0.0
    %642 = vmatpush.msra.mxu0 0.0
    %643 = vmatpush.msra.mxu0 0.0
    %644 = vmatpush.msra.mxu0 0.0
    %645 = vmatpush.msra.mxu0 %v632
    %646 = vmatpush.msra.mxu0 %v631
    %647 = vmatpush.msra.mxu0 %v630
    %648 = vmatpush.msra.mxu0 %v629
    %649 = vmatmul.f32.gmra.mxu0 %v89
    %v650 = vpop.f32.mrf.mxu0
    %v651 = vadd.f32 0.0, %v650
    %652 = vmatmul.f32.gmra.mxu0 %v92
    %v653 = vpop.f32.mrf.mxu0
    %v654 = vadd.f32 0.0, %v653
    %655 = vdwg.mxu0
    %v657 = vsel %vm87, %v651, 0
    %659 = vmatpush.msra.mxu0 0.0
    %660 = vmatpush.msra.mxu0 0.0
    %661 = vmatpush.msra.mxu0 0.0
    %662 = vmatpush.msra.mxu0 0.0
    %663 = vmatpush.msra.mxu0 0.0
    %664 = vmatpush.msra.mxu0 0.0
    %665 = vmatpush.msra.mxu0 0.0
    %666 = vmatpush.msra.mxu0 0.0
    %667 = vmatpush.msra.mxu0 0.0
    %668 = vmatpush.msra.mxu0 0.0
    %669 = vmatpush.msra.mxu0 0.0
    %670 = vmatpush.msra.mxu0 0.0
    %671 = vmatpush.msra.mxu0 %v374
    %672 = vmatpush.msra.mxu0 %v373
    %673 = vmatpush.msra.mxu0 %v372
    %674 = vmatpush.msra.mxu0 %v371
    %675 = vmatmul.f32.gmra.mxu0 %v657
    %v676 = vpop.f32.mrf.mxu0
    %v677 = vadd.f32 0.0, %v676
    %678 = vdwg.mxu0
    %v680 = vsel %vm87, %v654, 0
    %682 = vmatpush.msra.mxu0 0.0
    %683 = vmatpush.msra.mxu0 0.0
    %684 = vmatpush.msra.mxu0 0.0
    %685 = vmatpush.msra.mxu0 0.0
    %686 = vmatpush.msra.mxu0 0.0
    %687 = vmatpush.msra.mxu0 0.0
    %688 = vmatpush.msra.mxu0 0.0
    %689 = vmatpush.msra.mxu0 0.0
    %690 = vmatpush.msra.mxu0 0.0
    %691 = vmatpush.msra.mxu0 0.0
    %692 = vmatpush.msra.mxu0 0.0
    %693 = vmatpush.msra.mxu0 0.0
    %694 = vmatpush.msra.mxu0 %v378
    %695 = vmatpush.msra.mxu0 %v377
    %696 = vmatpush.msra.mxu0 %v376
    %697 = vmatpush.msra.mxu0 %v375
    %698 = vmatmul.f32.gmra.mxu0 %v680
    %v699 = vpop.f32.mrf.mxu0
    %v700 = vadd.f32 0.0, %v699
    %701 = vdwg.mxu0
    %702 = vrot.lane.b32.xlu0 %v651, 96
    %v703 = vpop.permute.xlu0 %702
    %v704 = vsel %vm87, %v703, 0
    %706 = vmatpush.msra.mxu0 0.0
    %707 = vmatpush.msra.mxu0 0.0
    %708 = vmatpush.msra.mxu0 0.0
    %709 = vmatpush.msra.mxu0 0.0
    %710 = vmatpush.msra.mxu0 0.0
    %711 = vmatpush.msra.mxu0 0.0
    %712 = vmatpush.msra.mxu0 0.0
    %713 = vmatpush.msra.mxu0 0.0
    %714 = vmatpush.msra.mxu0 0.0
    %715 = vmatpush.msra.mxu0 0.0
    %716 = vmatpush.msra.mxu0 0.0
    %717 = vmatpush.msra.mxu0 0.0
    %718 = vmatpush.msra.mxu0 %v624
    %719 = vmatpush.msra.mxu0 %v623
    %720 = vmatpush.msra.mxu0 %v622
    %721 = vmatpush.msra.mxu0 %v621
    %722 = vmatmul.f32.gmra.mxu0 %v704
    %v723 = vpop.f32.mrf.mxu0
    %v724 = vadd.f32 0.0, %v723
    %725 = vdwg.mxu0
    %726 = vrot.lane.b32.xlu0 %v654, 96
    %v727 = vpop.permute.xlu0 %726
    %v728 = vsel %vm87, %v727, 0
    %730 = vmatpush.msra.mxu0 0.0
    %731 = vmatpush.msra.mxu0 0.0
    %732 = vmatpush.msra.mxu0 0.0
    %733 = vmatpush.msra.mxu0 0.0
    %734 = vmatpush.msra.mxu0 0.0
    %735 = vmatpush.msra.mxu0 0.0
    %736 = vmatpush.msra.mxu0 0.0
    %737 = vmatpush.msra.mxu0 0.0
    %738 = vmatpush.msra.mxu0 0.0
    %739 = vmatpush.msra.mxu0 0.0
    %740 = vmatpush.msra.mxu0 0.0
    %741 = vmatpush.msra.mxu0 0.0
    %742 = vmatpush.msra.mxu0 %v628
    %743 = vmatpush.msra.mxu0 %v627
    %744 = vmatpush.msra.mxu0 %v626
    %745 = vmatpush.msra.mxu0 %v625
    %746 = vmatmul.f32.gmra.mxu0 %v728
    %v747 = vpop.f32.mrf.mxu0
    %v748 = vadd.f32 0.0, %v747
    %749 = vdwg.mxu0
    %752 = vrot.lane.b32.xlu0 %v724, 32
    %v753 = vpop.permute.xlu0 %752
    %754 = vrot.lane.b32.xlu0 %v748, 32
    %v755 = vpop.permute.xlu0 %754
    %v758 = vsel %vm87, %v677, %v753
    %v759 = vsel %vm87, %v700, %v755
    %vm760 = vcmask 523264
    %761 = vst.msk [vmem:[#allocation10] sm:$0xff] %vm760, %v758
    %762 = vst.msk [vmem:[#allocation10 + $0x8] sm:$0xff] %vm760, %v759
    // Predicated region
    $region34: #{tpu_custom_call.1} parent=1 // pred_check
      _
    $region35: #{tpu_custom_call.1} parent=1 // pred_check_branch
      %764 = sbr.rel (0) target = $region37
    $region36: #{tpu_custom_call.1} parent=1 // pred_region
      %766 = vsyncadd [#allocation4], 0
      %s767 = sshll.u32 [#allocation10], 4
      %s768 = int_to_ptr.vmem [resolvable:$true] %s767
      %s769 = sshll.u32 %s4, 4
      %s770 = int_to_ptr.hbm [resolvable:$true] %s769
      %775 = dma.vmem_to_hbm [thread:$0]  %s768, 256, %s770, [#allocation4], 128, 128, 8
    $region37: #{tpu_custom_call.1} parent=1 // pred_fallthru
      _
    // Predicated region
    $region38: #{tpu_custom_call.1} parent=1 // pred_check
      _
    $region39: #{tpu_custom_call.1} parent=1 // pred_check_branch
      %777 = sbr.rel (0) target = $region41
    $region40: #{tpu_custom_call.1} parent=1 // pred_region
      %779 = dma.done [#allocation4], 256
    $region41: #{tpu_custom_call.1} parent=1 // pred_fallthru
      _
    %780 = vsyncpa [#allocation3], 1
    %781 = vsyncpa [#allocation6], 1
    %782 = vsyncpa [#allocation9], 1
    %783 = vsyncpa [#allocation4], 1

</llo_original>
